<compile_context>
chip_gen: v7x
topology: tpu7x:2x2x1
jax: 0.10.0
libtpu: 0.0.40
codegen_flags: <defaults>
</compile_context>

<pallas_src>
import jax
import jax.numpy as jnp
from jax.experimental import pallas as pl
from jax.experimental.pallas import tpu as pltpu


def sgcn_kernel(st_ref, xt_ref, w1t_ref, b1_ref, w2t_ref, b2_ref,
                mmean_ref, wfc_max_ref, wfc_mean_ref, bfc_ref,
                out_ref):
    """Full SGCN forward in feature-major ([F, N]) layout.

    st_ref:       [Np, Np]  S^T (padded with zero rows/cols past the real N)
    xt_ref:       [Fp, Np]  node features, transposed + zero-padded
    w1t_ref:      [8, Fp]   W1^T (padded cols past real F are zero)
    b1_ref:       [8, 1]
    w2t_ref:      [16, 8]   W2^T
    b2_ref:       [16, 1]
    mmean_ref:    [B, Np]   membership / counts  (mmean[b, n] = 1/|G_b| iff n in G_b)
    wfc_max_ref:  [16, 2]   fc weight rows acting on the max-pooled half
    wfc_mean_ref: [16, 2]   fc weight rows acting on the mean-pooled half
    bfc_ref:      [1, 2]
    out_ref:      [B, 2]
    """
    st = st_ref[...]

    # ---- S^2 computed once, reused by both SGConv layers: (S^2)^T = S^T @ S^T
    s2t = jnp.dot(st, st, preferred_element_type=jnp.float32)           # [Np, Np]

    # ---- SGConv 1 (feature-major): h^T = relu(W1^T @ (x^T @ (S^2)^T) + b1)
    h = jnp.dot(xt_ref[...], s2t, preferred_element_type=jnp.float32)   # [Fp, Np]
    h = jnp.dot(w1t_ref[...], h, preferred_element_type=jnp.float32) + b1_ref[...]
    h = jnp.maximum(h, 0.0)                                              # [8, Np]

    # ---- SGConv 2
    h = jnp.dot(h, s2t, preferred_element_type=jnp.float32)             # [8, Np]
    h = jnp.dot(w2t_ref[...], h, preferred_element_type=jnp.float32) + b2_ref[...]
    h = jnp.maximum(h, 0.0)                                              # [16, Np]

    mmean = mmean_ref[...]                                               # [B, Np]

    # ---- global mean pool: MXU contraction over the node (lane) axis -> [B, 16]
    mean_pool = jnp.einsum('bn,fn->bf', mmean, h,
                           preferred_element_type=jnp.float32)

    # ---- global max pool: one broadcasted masked max over the node axis
    member = mmean > 0.0                                                 # [B, Np]
    masked = jnp.where(member[:, None, :], h[None, :, :], -1e30)         # [B, 16, Np]
    max_pool = jnp.max(masked, axis=-1)                                  # [B, 16]

    # ---- final linear: concat([max, mean]) @ Wfc + b, concat folded into split matmuls
    out_ref[...] = (
        jnp.dot(max_pool, wfc_max_ref[...], preferred_element_type=jnp.float32)
        + jnp.dot(mean_pool, wfc_mean_ref[...], preferred_element_type=jnp.float32)
        + bfc_ref[...])


def sgcn_forward(S, x, batch, num_graphs, params):
    N = S.shape[0]
    F_in = x.shape[1]
    B = num_graphs

    # Pad node axis to a multiple of 128 (lanes), feature axis to a multiple of 8.
    Np = ((N + 127) // 128) * 128
    Fp = ((F_in + 7) // 8) * 8

    # Feature-major, zero-padded inputs (zero padding of S / x / M is exact:
    # padded nodes never contribute to propagation or pooling).
    St = jnp.zeros((Np, Np), jnp.float32).at[:N, :N].set(S.T)
    xt = jnp.zeros((Fp, Np), jnp.float32).at[:F_in, :N].set(x.T)

    M = (batch[None, :] == jnp.arange(B, dtype=jnp.int32)[:, None]).astype(jnp.float32)
    counts = jnp.maximum(M.sum(axis=1, keepdims=True), 1.0)
    mmean = jnp.zeros((B, Np), jnp.float32).at[:, :N].set(M / counts)    # [B, Np]

    w1t = jnp.zeros((8, Fp), jnp.float32).at[:, :F_in].set(params["w1"].T)
    b1 = params["b1"].reshape(8, 1)
    w2t = params["w2"].T                                                 # [16, 8]
    b2 = params["b2"].reshape(16, 1)

    # Advisory cost estimate & VMEM budget (S and S^2 dominate).
    flops = int(2 * Np ** 3 + 2 * (Fp + 8) * Np ** 2
                + 2 * (8 * Fp + 16 * 8 + 2 * 16 * B) * Np)
    bytes_accessed = int(4 * (Np * Np + (Fp + 8 + 16 + B) * Np + 4 * B))
    vmem_limit = int(min(100 * 2 ** 20, max(8 * 2 ** 20, 12 * Np * Np * 4)))

    vmem = pl.BlockSpec(memory_space=pltpu.MemorySpace.VMEM)
    n_in = 10
    return pl.pallas_call(
        sgcn_kernel,
        out_shape=jax.ShapeDtypeStruct((B, 2), jnp.float32),
        in_specs=[vmem] * n_in,
        out_specs=vmem,
        compiler_params=pltpu.CompilerParams(vmem_limit_bytes=vmem_limit),
        cost_estimate=pl.CostEstimate(flops=flops, transcendentals=0,
                                      bytes_accessed=bytes_accessed),
    )(St, xt, w1t, b1, w2t, b2, mmean,
      params["wfc_max"], params["wfc_mean"], params["bfc"])


def build_normalized_adjacency(edge_index, num_nodes):
    """GCN normalization: S = D^{-1/2} (A + I) D^{-1/2} (glue, plain JAX)."""
    src, dst = edge_index
    A = jnp.zeros((num_nodes, num_nodes), jnp.float32).at[src, dst].set(1.0)
    A = A + jnp.eye(num_nodes, dtype=jnp.float32)
    deg = A.sum(axis=1)
    dinv = 1.0 / jnp.sqrt(deg)
    return dinv[:, None] * A * dinv[None, :]


def init_params(key, num_features):
    k = jax.random.split(key, 6)
    w1 = 0.1 * jax.random.normal(k[0], (num_features, 8), jnp.float32)
    b1 = 0.1 * jax.random.normal(k[1], (1, 8), jnp.float32)
    w2 = 0.1 * jax.random.normal(k[2], (8, 16), jnp.float32)
    b2 = 0.1 * jax.random.normal(k[3], (1, 16), jnp.float32)
    wfc = 0.1 * jax.random.normal(k[4], (32, 2), jnp.float32)   # Linear(2*16, 2), stored transposed
    bfc = 0.1 * jax.random.normal(k[5], (1, 2), jnp.float32)
    return {
        "w1": w1, "b1": b1, "w2": w2, "b2": b2,
        "wfc_max": wfc[:16, :],    # acts on max-pooled half of the concat
        "wfc_mean": wfc[16:, :],   # acts on mean-pooled half of the concat
        "bfc": bfc,
    }


if __name__ == "__main__":
    key = jax.random.PRNGKey(0)
    k_x, k_p = jax.random.split(key)

    num_features = 4
    nodes_per_graph = 6
    B = 2
    N = B * nodes_per_graph

    # Node features
    x = jax.random.normal(k_x, (N, num_features), jnp.float32)

    # Deterministic undirected ring edges within each graph
    srcs, dsts = [], []
    for g in range(B):
        base = g * nodes_per_graph
        for i in range(nodes_per_graph):
            a = base + i
            b = base + (i + 1) % nodes_per_graph
            srcs += [a, b]
            dsts += [b, a]
    edge_index = (jnp.array(srcs, jnp.int32), jnp.array(dsts, jnp.int32))

    # Graph membership ("batch" vector)
    batch = jnp.repeat(jnp.arange(B, dtype=jnp.int32), nodes_per_graph)   # [N]

    S = build_normalized_adjacency(edge_index, N)
    params = init_params(k_p, num_features)

    out = sgcn_forward(S, x, batch, B, params)
    out = jax.block_until_ready(out)

    # Pure-JAX reference for sanity
    M = (batch[None, :] == jnp.arange(B, dtype=jnp.int32)[:, None]).astype(jnp.float32)
    counts = M.sum(axis=1, keepdims=True)
    h = jnp.maximum(S @ (S @ x) @ params["w1"] + params["b1"], 0.0)
    h = jnp.maximum(S @ (S @ h) @ params["w2"] + params["b2"], 0.0)
    mean_ref = (M @ h) / counts
    max_ref = jnp.stack([jnp.max(jnp.where(M[b][:, None] > 0, h, -1e30), axis=0)
                         for b in range(B)], axis=0)
    y_ref = max_ref @ params["wfc_max"] + mean_ref @ params["wfc_mean"] + params["bfc"]
    assert out.shape == (B, 2)
    assert jnp.allclose(out, y_ref, atol=1e-4, rtol=1e-4), (out, y_ref)

    print("KERNEL_OK")
</pallas_src>

<mosaic_0001>
module attributes {stable_mosaic.version = 11 : i64} {
  func.func @sgcn_kernel(%arg0: memref<128x128xf32, #tpu.memory_space<vmem>>, %arg1: memref<8x128xf32, #tpu.memory_space<vmem>>, %arg2: memref<8x8xf32, #tpu.memory_space<vmem>>, %arg3: memref<8x1xf32, #tpu.memory_space<vmem>>, %arg4: memref<16x8xf32, #tpu.memory_space<vmem>>, %arg5: memref<16x1xf32, #tpu.memory_space<vmem>>, %arg6: memref<2x128xf32, #tpu.memory_space<vmem>>, %arg7: memref<16x2xf32, #tpu.memory_space<vmem>>, %arg8: memref<16x2xf32, #tpu.memory_space<vmem>>, %arg9: memref<1x2xf32, #tpu.memory_space<vmem>>, %arg10: memref<2x2xf32, #tpu.memory_space<vmem>>) attributes {dimension_semantics = [], scalar_prefetch = 0 : i64, scratch_operands = 0 : i64, tpu.core_type = #tpu.core_type<tc>} {
    %c0 = arith.constant 0 : index
    %c0_0 = arith.constant 0 : index
    %0 = vector.load %arg0[%c0, %c0_0] : memref<128x128xf32, #tpu.memory_space<vmem>>, vector<128x128xf32>
    %cst = arith.constant dense<0.000000e+00> : vector<128x128xf32>
    %1 = tpu.matmul %0, %0, %cst {dimension_numbers = #tpu.dot_dimension_numbers<[1], [0], [0], [1], [0, 0, 1, 1], [], []>} : vector<128x128xf32>, vector<128x128xf32>, vector<128x128xf32> -> vector<128x128xf32>
    %c0_1 = arith.constant 0 : index
    %c0_2 = arith.constant 0 : index
    %2 = vector.load %arg1[%c0_1, %c0_2] : memref<8x128xf32, #tpu.memory_space<vmem>>, vector<8x128xf32>
    %cst_3 = arith.constant dense<0.000000e+00> : vector<8x128xf32>
    %3 = tpu.matmul %2, %1, %cst_3 {dimension_numbers = #tpu.dot_dimension_numbers<[1], [0], [0], [1], [0, 0, 1, 1], [], []>} : vector<8x128xf32>, vector<128x128xf32>, vector<8x128xf32> -> vector<8x128xf32>
    %c0_4 = arith.constant 0 : index
    %c0_5 = arith.constant 0 : index
    %4 = vector.load %arg2[%c0_4, %c0_5] : memref<8x8xf32, #tpu.memory_space<vmem>>, vector<8x8xf32>
    %cst_6 = arith.constant dense<0.000000e+00> : vector<8x128xf32>
    %5 = tpu.matmul %4, %3, %cst_6 {dimension_numbers = #tpu.dot_dimension_numbers<[1], [0], [0], [1], [0, 0, 1, 1], [], []>} : vector<8x8xf32>, vector<8x128xf32>, vector<8x128xf32> -> vector<8x128xf32>
    %c0_7 = arith.constant 0 : index
    %c0_8 = arith.constant 0 : index
    %6 = vector.load %arg3[%c0_7, %c0_8] : memref<8x1xf32, #tpu.memory_space<vmem>>, vector<8x1xf32>
    %7 = vector.broadcast %6 : vector<8x1xf32> to vector<8x128xf32>
    %8 = arith.addf %5, %7 : vector<8x128xf32>
    %cst_9 = arith.constant 0.000000e+00 : f32
    %9 = vector.broadcast %cst_9 : f32 to vector<8x128xf32>
    %10 = arith.maximumf %8, %9 : vector<8x128xf32>
    %cst_10 = arith.constant dense<0.000000e+00> : vector<8x128xf32>
    %11 = tpu.matmul %10, %1, %cst_10 {dimension_numbers = #tpu.dot_dimension_numbers<[1], [0], [0], [1], [0, 0, 1, 1], [], []>} : vector<8x128xf32>, vector<128x128xf32>, vector<8x128xf32> -> vector<8x128xf32>
    %c0_11 = arith.constant 0 : index
    %c0_12 = arith.constant 0 : index
    %12 = vector.load %arg4[%c0_11, %c0_12] : memref<16x8xf32, #tpu.memory_space<vmem>>, vector<16x8xf32>
    %cst_13 = arith.constant dense<0.000000e+00> : vector<16x128xf32>
    %13 = tpu.matmul %12, %11, %cst_13 {dimension_numbers = #tpu.dot_dimension_numbers<[1], [0], [0], [1], [0, 0, 1, 1], [], []>} : vector<16x8xf32>, vector<8x128xf32>, vector<16x128xf32> -> vector<16x128xf32>
    %c0_14 = arith.constant 0 : index
    %c0_15 = arith.constant 0 : index
    %14 = vector.load %arg5[%c0_14, %c0_15] : memref<16x1xf32, #tpu.memory_space<vmem>>, vector<16x1xf32>
    %15 = vector.broadcast %14 : vector<16x1xf32> to vector<16x128xf32>
    %16 = arith.addf %13, %15 : vector<16x128xf32>
    %cst_16 = arith.constant 0.000000e+00 : f32
    %17 = vector.broadcast %cst_16 : f32 to vector<16x128xf32>
    %18 = arith.maximumf %16, %17 : vector<16x128xf32>
    %c0_17 = arith.constant 0 : index
    %c0_18 = arith.constant 0 : index
    %19 = vector.load %arg6[%c0_17, %c0_18] : memref<2x128xf32, #tpu.memory_space<vmem>>, vector<2x128xf32>
    "tpu.trace_start"() <{level = 10 : i32, message = "bn,fn->bf"}> : () -> ()
    %cst_19 = arith.constant dense<0.000000e+00> : vector<2x16xf32>
    %20 = tpu.matmul %19, %18, %cst_19 {dimension_numbers = #tpu.dot_dimension_numbers<[1], [1], [0], [0], [0, 0, 1, 0], [], []>} : vector<2x128xf32>, vector<16x128xf32>, vector<2x16xf32> -> vector<2x16xf32>
    %cst_20 = arith.constant 0.000000e+00 : f32
    "tpu.trace_stop"() : () -> ()
    %21 = vector.broadcast %cst_20 : f32 to vector<2x128xf32>
    %22 = arith.cmpf ogt, %19, %21 : vector<2x128xf32>
    %23 = vector.shape_cast %22 : vector<2x128xi1> to vector<2x1x128xi1>
    %24 = vector.shape_cast %18 : vector<16x128xf32> to vector<1x16x128xf32>
    %cst_21 = arith.constant -1.000000e+30 : f32
    %25 = vector.shape_cast %23 : vector<2x1x128xi1> to vector<2x1x128xi1>
    %26 = vector.broadcast %25 : vector<2x1x128xi1> to vector<2x16x128xi1>
    %27 = vector.shape_cast %24 : vector<1x16x128xf32> to vector<1x16x128xf32>
    %28 = vector.broadcast %27 : vector<1x16x128xf32> to vector<2x16x128xf32>
    %29 = vector.broadcast %cst_21 : f32 to vector<2x16x128xf32>
    %30 = arith.select %26, %28, %29 : vector<2x16x128xi1>, vector<2x16x128xf32>
    %cst_22 = arith.constant dense<0xFF800000> : vector<2x16xf32>
    %31 = vector.multi_reduction <maximumf>, %30, %cst_22 [2] : vector<2x16x128xf32> to vector<2x16xf32>
    %c0_23 = arith.constant 0 : index
    %c0_24 = arith.constant 0 : index
    %32 = vector.load %arg7[%c0_23, %c0_24] : memref<16x2xf32, #tpu.memory_space<vmem>>, vector<16x2xf32>
    %cst_25 = arith.constant dense<0.000000e+00> : vector<2x2xf32>
    %33 = tpu.matmul %31, %32, %cst_25 {dimension_numbers = #tpu.dot_dimension_numbers<[1], [0], [0], [1], [0, 0, 1, 1], [], []>} : vector<2x16xf32>, vector<16x2xf32>, vector<2x2xf32> -> vector<2x2xf32>
    %c0_26 = arith.constant 0 : index
    %c0_27 = arith.constant 0 : index
    %34 = vector.load %arg8[%c0_26, %c0_27] : memref<16x2xf32, #tpu.memory_space<vmem>>, vector<16x2xf32>
    %cst_28 = arith.constant dense<0.000000e+00> : vector<2x2xf32>
    %35 = tpu.matmul %20, %34, %cst_28 {dimension_numbers = #tpu.dot_dimension_numbers<[1], [0], [0], [1], [0, 0, 1, 1], [], []>} : vector<2x16xf32>, vector<16x2xf32>, vector<2x2xf32> -> vector<2x2xf32>
    %36 = arith.addf %33, %35 : vector<2x2xf32>
    %c0_29 = arith.constant 0 : index
    %c0_30 = arith.constant 0 : index
    %37 = vector.load %arg9[%c0_29, %c0_30] : memref<1x2xf32, #tpu.memory_space<vmem>>, vector<1x2xf32>
    %38 = vector.broadcast %37 : vector<1x2xf32> to vector<2x2xf32>
    %39 = arith.addf %36, %38 : vector<2x2xf32>
    %c0_31 = arith.constant 0 : index
    %c0_32 = arith.constant 0 : index
    %40 = vector.load %arg10[%c0_31, %c0_32] : memref<2x2xf32, #tpu.memory_space<vmem>>, vector<2x2xf32>
    tpu.vector_store %arg10[%c0_31, %c0_32], %39 {strides = array<i32>} : memref<2x2xf32, #tpu.memory_space<vmem>>, vector<2x2xf32>,
    return
  }
}

</mosaic_0001>

<llo_original>
// kernel: tpu_custom_call.1
$region0: #{tpu_custom_call.1}
  #allocation0 [shape = 'u32[]', space=smem, size = 0x4, offset = 0x4, fixed_abs, tag = 'smem constant byte address 0x4 - core index']
  #allocation1 [shape = 'u32[144,128]{1,0:T(1,128)}', space=vmem, size = 0x12000, scoped, tag = 'internal scratch']
  %s0 = inlined_call_operand.hbm [shape: f32[128,128], index: 0, kind: input, shape index: {}]
  %s1 = inlined_call_operand.vmem [shape: f32[8,128], index: 1, kind: input, shape index: {}]
  %s2 = inlined_call_operand.vmem [shape: f32[8,8], index: 2, kind: input, shape index: {}]
  %s3 = inlined_call_operand.vmem [shape: f32[8,1], index: 3, kind: input, shape index: {}]
  %s4 = inlined_call_operand.vmem [shape: f32[16,8], index: 4, kind: input, shape index: {}]
  %s5 = inlined_call_operand.vmem [shape: f32[16,1], index: 5, kind: input, shape index: {}]
  %s6 = inlined_call_operand.vmem [shape: f32[2,128], index: 6, kind: input, shape index: {}]
  %s7 = inlined_call_operand.vmem [shape: f32[16,2], index: 7, kind: input, shape index: {}]
  %s8 = inlined_call_operand.vmem [shape: f32[16,2], index: 8, kind: input, shape index: {}]
  %s9 = inlined_call_operand.vmem [shape: f32[1,2], index: 9, kind: input, shape index: {}]
  %s10 = inlined_call_operand.hbm [shape: f32[2,2], index: 10, kind: output, shape index: {}]
  %s11 = sld [smem:[#allocation0]]
  $region54: #{tpu_custom_call.1} parent=0
    _
  %s13 = ssub.s32 1, %s11
  %s14 = scalar_select 0, %s13, %s11
  $region1: #{tpu_custom_call.1} parent=0
    #allocation2 [shape = 'u8[65536]{0}', space=vmem, size = 0x10000, scoped, tag = 'input window, operand 0, single buffered']
    #allocation3 [shape = 's32[1]{0}', space=sflag, size = 0x4, scoped, tag = 'scoped memory for tpu_custom_call.1']
    #allocation4 [shape = 's32[1]{0}', space=sflag, size = 0x4, scoped, tag = 'scoped memory for tpu_custom_call.1']
    #allocation5 [shape = 'u8[1024]{0}', space=vmem, size = 0x400, scoped, tag = 'output window, operand 0, single buffered']
    %15 = vsyncpa [#allocation3], 0
    %16 = vsyncpa [#allocation4], 0
    // Predicated region
    $region2: #{tpu_custom_call.1} parent=1 // pred_check
      _
    $region3: #{tpu_custom_call.1} parent=1 // pred_check_branch
      %18 = sbr.rel (0) target = $region5
    $region4: #{tpu_custom_call.1} parent=1 // pred_region
      %s20 = ssub.s32 2048, 2048
      %21 = vsyncadd [#allocation3], %s20
      %s22 = sshll.u32 [#allocation2], 4
      %s23 = int_to_ptr.vmem [resolvable:$true] %s22
      %28 = dma.hbm_to_vmem [thread:$0]  %s0, 2048, %s23, [#allocation3], 128, 128, 8
    $region5: #{tpu_custom_call.1} parent=1 // pred_fallthru
      _
    // Predicated region
    $region6: #{tpu_custom_call.1} parent=1 // pred_check
      _
    $region7: #{tpu_custom_call.1} parent=1 // pred_check_branch
      %30 = sbr.rel (0) target = $region9
    $region8: #{tpu_custom_call.1} parent=1 // pred_region
      _
    $region9: #{tpu_custom_call.1} parent=1 // pred_fallthru
      _
    // Predicated region
    $region10: #{tpu_custom_call.1} parent=1 // pred_check
      _
    $region11: #{tpu_custom_call.1} parent=1 // pred_check_branch
      %32 = sbr.rel (0) target = $region13
    $region12: #{tpu_custom_call.1} parent=1 // pred_region
      _
    $region13: #{tpu_custom_call.1} parent=1 // pred_fallthru
      _
    // Predicated region
    $region14: #{tpu_custom_call.1} parent=1 // pred_check
      _
    $region15: #{tpu_custom_call.1} parent=1 // pred_check_branch
      %34 = sbr.rel (0) target = $region17
    $region16: #{tpu_custom_call.1} parent=1 // pred_region
      _
    $region17: #{tpu_custom_call.1} parent=1 // pred_fallthru
      _
    // Predicated region
    $region18: #{tpu_custom_call.1} parent=1 // pred_check
      _
    $region19: #{tpu_custom_call.1} parent=1 // pred_check_branch
      %36 = sbr.rel (0) target = $region21
    $region20: #{tpu_custom_call.1} parent=1 // pred_region
      _
    $region21: #{tpu_custom_call.1} parent=1 // pred_fallthru
      _
    // Predicated region
    $region22: #{tpu_custom_call.1} parent=1 // pred_check
      _
    $region23: #{tpu_custom_call.1} parent=1 // pred_check_branch
      %38 = sbr.rel (0) target = $region25
    $region24: #{tpu_custom_call.1} parent=1 // pred_region
      _
    $region25: #{tpu_custom_call.1} parent=1 // pred_fallthru
      _
    // Predicated region
    $region26: #{tpu_custom_call.1} parent=1 // pred_check
      _
    $region27: #{tpu_custom_call.1} parent=1 // pred_check_branch
      %40 = sbr.rel (0) target = $region29
    $region28: #{tpu_custom_call.1} parent=1 // pred_region
      _
    $region29: #{tpu_custom_call.1} parent=1 // pred_fallthru
      _
    // Predicated region
    $region30: #{tpu_custom_call.1} parent=1 // pred_check
      _
    $region31: #{tpu_custom_call.1} parent=1 // pred_check_branch
      %42 = sbr.rel (0) target = $region33
    $region32: #{tpu_custom_call.1} parent=1 // pred_region
      _
    $region33: #{tpu_custom_call.1} parent=1 // pred_fallthru
      _
    // Predicated region
    $region34: #{tpu_custom_call.1} parent=1 // pred_check
      _
    $region35: #{tpu_custom_call.1} parent=1 // pred_check_branch
      %44 = sbr.rel (0) target = $region37
    $region36: #{tpu_custom_call.1} parent=1 // pred_region
      _
    $region37: #{tpu_custom_call.1} parent=1 // pred_fallthru
      _
    // Predicated region
    $region38: #{tpu_custom_call.1} parent=1 // pred_check
      _
    $region39: #{tpu_custom_call.1} parent=1 // pred_check_branch
      %46 = sbr.rel (0) target = $region41
    $region40: #{tpu_custom_call.1} parent=1 // pred_region
      _
    $region41: #{tpu_custom_call.1} parent=1 // pred_fallthru
      _
    // Predicated region
    $region42: #{tpu_custom_call.1} parent=1 // pred_check
      _
    $region43: #{tpu_custom_call.1} parent=1 // pred_check_branch
      %48 = sbr.rel (0) target = $region45
    $region44: #{tpu_custom_call.1} parent=1 // pred_region
      %49 = dma.done [#allocation3], 2048
    $region45: #{tpu_custom_call.1} parent=1 // pred_fallthru
      _
    %v50 = vld [vmem:[#allocation2] sm:$0xff]
    %v51 = vld [vmem:[#allocation2 + $0x8] sm:$0xff]
    %v52 = vld [vmem:[#allocation2 + $0x10] sm:$0xff]
    %v53 = vld [vmem:[#allocation2 + $0x18] sm:$0xff]
    %v54 = vld [vmem:[#allocation2 + $0x20] sm:$0xff]
    %v55 = vld [vmem:[#allocation2 + $0x28] sm:$0xff]
    %v56 = vld [vmem:[#allocation2 + $0x30] sm:$0xff]
    %v57 = vld [vmem:[#allocation2 + $0x38] sm:$0xff]
    %v58 = vld [vmem:[#allocation2 + $0x40] sm:$0xff]
    %v59 = vld [vmem:[#allocation2 + $0x48] sm:$0xff]
    %v60 = vld [vmem:[#allocation2 + $0x50] sm:$0xff]
    %v61 = vld [vmem:[#allocation2 + $0x58] sm:$0xff]
    %v62 = vld [vmem:[#allocation2 + $0x60] sm:$0xff]
    %v63 = vld [vmem:[#allocation2 + $0x68] sm:$0xff]
    %v64 = vld [vmem:[#allocation2 + $0x70] sm:$0xff]
    %v65 = vld [vmem:[#allocation2 + $0x78] sm:$0xff]
    %66 = vmatprep.subr.mxu0 0.0
    %67 = vmatpush1.msra.mxu0 %v50
    %68 = vmatprep.subr.mxu0 0.0
    %69 = vmatpush1.msra.mxu0 %v51
    %70 = vmatprep.subr.mxu0 0.0
    %71 = vmatpush1.msra.mxu0 %v52
    %72 = vmatprep.subr.mxu0 0.0
    %73 = vmatpush1.msra.mxu0 %v53
    %74 = vmatprep.subr.mxu0 0.0
    %75 = vmatpush1.msra.mxu0 %v54
    %76 = vmatprep.subr.mxu0 0.0
    %77 = vmatpush1.msra.mxu0 %v55
    %78 = vmatprep.subr.mxu0 0.0
    %79 = vmatpush1.msra.mxu0 %v56
    %80 = vmatprep.subr.mxu0 0.0
    %81 = vmatpush1.msra.mxu0 %v57
    %82 = vmatprep.subr.mxu0 0.0
    %83 = vmatpush1.msra.mxu0 %v58
    %84 = vmatprep.subr.mxu0 0.0
    %85 = vmatpush1.msra.mxu0 %v59
    %86 = vmatprep.subr.mxu0 0.0
    %87 = vmatpush1.msra.mxu0 %v60
    %88 = vmatprep.subr.mxu0 0.0
    %89 = vmatpush1.msra.mxu0 %v61
    %90 = vmatprep.subr.mxu0 0.0
    %91 = vmatpush1.msra.mxu0 %v62
    %92 = vmatprep.subr.mxu0 0.0
    %93 = vmatpush1.msra.mxu0 %v63
    %94 = vmatprep.subr.mxu0 0.0
    %95 = vmatpush1.msra.mxu0 %v64
    %96 = vmatprep.subr.mxu0 0.0
    %97 = vmatpush1.msra.mxu0 %v65
    %98 = vmatprep.subr.mxu0 0.0
    %99 = vmatpush1.msra.mxu0 0.0
    %100 = vmatprep.subr.mxu0 0.0
    %101 = vmatpush1.msra.mxu0 0.0
    %102 = vmatprep.subr.mxu0 0.0
    %103 = vmatpush1.msra.mxu0 0.0
    %104 = vmatprep.subr.mxu0 0.0
    %105 = vmatpush1.msra.mxu0 0.0
    %106 = vmatprep.subr.mxu0 0.0
    %107 = vmatpush1.msra.mxu0 0.0
    %108 = vmatprep.subr.mxu0 0.0
    %109 = vmatpush1.msra.mxu0 0.0
    %110 = vmatprep.subr.mxu0 0.0
    %111 = vmatpush1.msra.mxu0 0.0
    %112 = vmatprep.subr.mxu0 0.0
    %113 = vmatpush1.msra.mxu0 0.0
    %114 = vmatprep.subr.mxu0 0.0
    %115 = vmatpush1.msra.mxu0 0.0
    %116 = vmatprep.subr.mxu0 0.0
    %117 = vmatpush1.msra.mxu0 0.0
    %118 = vmatprep.subr.mxu0 0.0
    %119 = vmatpush1.msra.mxu0 0.0
    %120 = vmatprep.subr.mxu0 0.0
    %121 = vmatpush1.msra.mxu0 0.0
    %122 = vmatprep.subr.mxu0 0.0
    %123 = vmatpush1.msra.mxu0 0.0
    %124 = vmatprep.subr.mxu0 0.0
    %125 = vmatpush1.msra.mxu0 0.0
    %126 = vmatprep.subr.mxu0 0.0
    %127 = vmatpush1.msra.mxu0 0.0
    %128 = vmatprep.subr.mxu0 0.0
    %129 = vmatpush1.msra.mxu0 0.0
    %130 = vmatprep.mubr.f32.mxu0 0.0
    %131 = vmatmul.mubr.f32.gmra.mrb[0].mxu0 %v50
    %v132 = vpop.f32.mrb[0].mxu0
    %v133 = vadd.f32 0.0, %v132
    %v134 = vpop.f32.mrb[0].mxu0
    %135 = vmatprep.mubr.f32.mxu0 0.0
    %136 = vmatmul.mubr.f32.gmra.mrb[0].mxu0 %v51
    %v137 = vpop.f32.mrb[0].mxu0
    %v138 = vadd.f32 0.0, %v137
    %v139 = vpop.f32.mrb[0].mxu0
    %140 = vmatprep.mubr.f32.mxu0 0.0
    %141 = vmatmul.mubr.f32.gmra.mrb[0].mxu0 %v52
    %v142 = vpop.f32.mrb[0].mxu0
    %v143 = vadd.f32 0.0, %v142
    %v144 = vpop.f32.mrb[0].mxu0
    %145 = vmatprep.mubr.f32.mxu0 0.0
    %146 = vmatmul.mubr.f32.gmra.mrb[0].mxu0 %v53
    %v147 = vpop.f32.mrb[0].mxu0
    %v148 = vadd.f32 0.0, %v147
    %v149 = vpop.f32.mrb[0].mxu0
    %150 = vmatprep.mubr.f32.mxu0 0.0
    %151 = vmatmul.mubr.f32.gmra.mrb[0].mxu0 %v54
    %v152 = vpop.f32.mrb[0].mxu0
    %v153 = vadd.f32 0.0, %v152
    %v154 = vpop.f32.mrb[0].mxu0
    %155 = vmatprep.mubr.f32.mxu0 0.0
    %156 = vmatmul.mubr.f32.gmra.mrb[0].mxu0 %v55
    %v157 = vpop.f32.mrb[0].mxu0
    %v158 = vadd.f32 0.0, %v157
    %v159 = vpop.f32.mrb[0].mxu0
    %160 = vmatprep.mubr.f32.mxu0 0.0
    %161 = vmatmul.mubr.f32.gmra.mrb[0].mxu0 %v56
    %v162 = vpop.f32.mrb[0].mxu0
    %v163 = vadd.f32 0.0, %v162
    %v164 = vpop.f32.mrb[0].mxu0
    %165 = vmatprep.mubr.f32.mxu0 0.0
    %166 = vmatmul.mubr.f32.gmra.mrb[0].mxu0 %v57
    %v167 = vpop.f32.mrb[0].mxu0
    %v168 = vadd.f32 0.0, %v167
    %v169 = vpop.f32.mrb[0].mxu0
    %170 = vmatprep.mubr.f32.mxu0 0.0
    %171 = vmatmul.mubr.f32.gmra.mrb[0].mxu0 %v58
    %v172 = vpop.f32.mrb[0].mxu0
    %v173 = vadd.f32 0.0, %v172
    %v174 = vpop.f32.mrb[0].mxu0
    %175 = vmatprep.mubr.f32.mxu0 0.0
    %176 = vmatmul.mubr.f32.gmra.mrb[0].mxu0 %v59
    %v177 = vpop.f32.mrb[0].mxu0
    %v178 = vadd.f32 0.0, %v177
    %v179 = vpop.f32.mrb[0].mxu0
    %180 = vmatprep.mubr.f32.mxu0 0.0
    %181 = vmatmul.mubr.f32.gmra.mrb[0].mxu0 %v60
    %v182 = vpop.f32.mrb[0].mxu0
    %v183 = vadd.f32 0.0, %v182
    %v184 = vpop.f32.mrb[0].mxu0
    %185 = vmatprep.mubr.f32.mxu0 0.0
    %186 = vmatmul.mubr.f32.gmra.mrb[0].mxu0 %v61
    %v187 = vpop.f32.mrb[0].mxu0
    %v188 = vadd.f32 0.0, %v187
    %v189 = vpop.f32.mrb[0].mxu0
    %190 = vmatprep.mubr.f32.mxu0 0.0
    %191 = vmatmul.mubr.f32.gmra.mrb[0].mxu0 %v62
    %v192 = vpop.f32.mrb[0].mxu0
    %v193 = vadd.f32 0.0, %v192
    %v194 = vpop.f32.mrb[0].mxu0
    %195 = vmatprep.mubr.f32.mxu0 0.0
    %196 = vmatmul.mubr.f32.gmra.mrb[0].mxu0 %v63
    %v197 = vpop.f32.mrb[0].mxu0
    %v198 = vadd.f32 0.0, %v197
    %v199 = vpop.f32.mrb[0].mxu0
    %200 = vmatprep.mubr.f32.mxu0 0.0
    %201 = vmatmul.mubr.f32.gmra.mrb[0].mxu0 %v64
    %v202 = vpop.f32.mrb[0].mxu0
    %v203 = vadd.f32 0.0, %v202
    %v204 = vpop.f32.mrb[0].mxu0
    %205 = vmatprep.mubr.f32.mxu0 0.0
    %206 = vmatmul.mubr.f32.gmra.mrb[0].mxu0 %v65
    %v207 = vpop.f32.mrb[0].mxu0
    %v208 = vadd.f32 0.0, %v207
    %v209 = vpop.f32.mrb[0].mxu0
    %210 = vdwg.mxu0
    %v211 = vld [vmem:[%s1] sm:$0xff]
    %212 = vmatprep.subr.mxu0 0.0
    %213 = vmatpush1.msra.mxu0 %v133
    %214 = vmatprep.subr.mxu0 0.0
    %215 = vmatpush1.msra.mxu0 %v138
    %216 = vmatprep.subr.mxu0 0.0
    %217 = vmatpush1.msra.mxu0 %v143
    %218 = vmatprep.subr.mxu0 0.0
    %219 = vmatpush1.msra.mxu0 %v148
    %220 = vmatprep.subr.mxu0 0.0
    %221 = vmatpush1.msra.mxu0 %v153
    %222 = vmatprep.subr.mxu0 0.0
    %223 = vmatpush1.msra.mxu0 %v158
    %224 = vmatprep.subr.mxu0 0.0
    %225 = vmatpush1.msra.mxu0 %v163
    %226 = vmatprep.subr.mxu0 0.0
    %227 = vmatpush1.msra.mxu0 %v168
    %228 = vmatprep.subr.mxu0 0.0
    %229 = vmatpush1.msra.mxu0 %v173
    %230 = vmatprep.subr.mxu0 0.0
    %231 = vmatpush1.msra.mxu0 %v178
    %232 = vmatprep.subr.mxu0 0.0
    %233 = vmatpush1.msra.mxu0 %v183
    %234 = vmatprep.subr.mxu0 0.0
    %235 = vmatpush1.msra.mxu0 %v188
    %236 = vmatprep.subr.mxu0 0.0
    %237 = vmatpush1.msra.mxu0 %v193
    %238 = vmatprep.subr.mxu0 0.0
    %239 = vmatpush1.msra.mxu0 %v198
    %240 = vmatprep.subr.mxu0 0.0
    %241 = vmatpush1.msra.mxu0 %v203
    %242 = vmatprep.subr.mxu0 0.0
    %243 = vmatpush1.msra.mxu0 %v208
    %244 = vmatprep.subr.mxu0 0.0
    %245 = vmatpush1.msra.mxu0 0.0
    %246 = vmatprep.subr.mxu0 0.0
    %247 = vmatpush1.msra.mxu0 0.0
    %248 = vmatprep.subr.mxu0 0.0
    %249 = vmatpush1.msra.mxu0 0.0
    %250 = vmatprep.subr.mxu0 0.0
    %251 = vmatpush1.msra.mxu0 0.0
    %252 = vmatprep.subr.mxu0 0.0
    %253 = vmatpush1.msra.mxu0 0.0
    %254 = vmatprep.subr.mxu0 0.0
    %255 = vmatpush1.msra.mxu0 0.0
    %256 = vmatprep.subr.mxu0 0.0
    %257 = vmatpush1.msra.mxu0 0.0
    %258 = vmatprep.subr.mxu0 0.0
    %259 = vmatpush1.msra.mxu0 0.0
    %260 = vmatprep.subr.mxu0 0.0
    %261 = vmatpush1.msra.mxu0 0.0
    %262 = vmatprep.subr.mxu0 0.0
    %263 = vmatpush1.msra.mxu0 0.0
    %264 = vmatprep.subr.mxu0 0.0
    %265 = vmatpush1.msra.mxu0 0.0
    %266 = vmatprep.subr.mxu0 0.0
    %267 = vmatpush1.msra.mxu0 0.0
    %268 = vmatprep.subr.mxu0 0.0
    %269 = vmatpush1.msra.mxu0 0.0
    %270 = vmatprep.subr.mxu0 0.0
    %271 = vmatpush1.msra.mxu0 0.0
    %272 = vmatprep.subr.mxu0 0.0
    %273 = vmatpush1.msra.mxu0 0.0
    %274 = vmatprep.subr.mxu0 0.0
    %275 = vmatpush1.msra.mxu0 0.0
    %276 = vmatprep.mubr.f32.mxu0 0.0
    %277 = vmatmul.mubr.f32.gmra.mrb[0].mxu0 %v211
    %v278 = vpop.f32.mrb[0].mxu0
    %v279 = vadd.f32 0.0, %v278
    %v280 = vpop.f32.mrb[0].mxu0
    %281 = vdwg.mxu0
    %v282 = vld [vmem:[%s2] sm:$0xff]
    %v283 = vld [vmem:[%s3] sm:$0xff]
    %285 = vset.pattern.permute.xlu0 0
    %286 = vperm.xlu0 %285, %v283
    %v287 = vpop.permute.xlu0 %286
    %vm289 = vcmask 64512
    %v291 = vsel %vm289, %v282, 0
    %293 = vmatprep.subr.mxu0 0.0
    %294 = vmatpush1.msra.mxu0 %v279
    %295 = vmatprep.subr.mxu0 0.0
    %296 = vmatpush1.msra.mxu0 0.0
    %297 = vmatprep.subr.mxu0 0.0
    %298 = vmatpush1.msra.mxu0 0.0
    %299 = vmatprep.subr.mxu0 0.0
    %300 = vmatpush1.msra.mxu0 0.0
    %301 = vmatprep.subr.mxu0 0.0
    %302 = vmatpush1.msra.mxu0 0.0
    %303 = vmatprep.subr.mxu0 0.0
    %304 = vmatpush1.msra.mxu0 0.0
    %305 = vmatprep.subr.mxu0 0.0
    %306 = vmatpush1.msra.mxu0 0.0
    %307 = vmatprep.subr.mxu0 0.0
    %308 = vmatpush1.msra.mxu0 0.0
    %309 = vmatprep.subr.mxu0 0.0
    %310 = vmatpush1.msra.mxu0 0.0
    %311 = vmatprep.subr.mxu0 0.0
    %312 = vmatpush1.msra.mxu0 0.0
    %313 = vmatprep.subr.mxu0 0.0
    %314 = vmatpush1.msra.mxu0 0.0
    %315 = vmatprep.subr.mxu0 0.0
    %316 = vmatpush1.msra.mxu0 0.0
    %317 = vmatprep.subr.mxu0 0.0
    %318 = vmatpush1.msra.mxu0 0.0
    %319 = vmatprep.subr.mxu0 0.0
    %320 = vmatpush1.msra.mxu0 0.0
    %321 = vmatprep.subr.mxu0 0.0
    %322 = vmatpush1.msra.mxu0 0.0
    %323 = vmatprep.subr.mxu0 0.0
    %324 = vmatpush1.msra.mxu0 0.0
    %325 = vmatprep.subr.mxu0 0.0
    %326 = vmatpush1.msra.mxu0 0.0
    %327 = vmatprep.subr.mxu0 0.0
    %328 = vmatpush1.msra.mxu0 0.0
    %329 = vmatprep.subr.mxu0 0.0
    %330 = vmatpush1.msra.mxu0 0.0
    %331 = vmatprep.subr.mxu0 0.0
    %332 = vmatpush1.msra.mxu0 0.0
    %333 = vmatprep.subr.mxu0 0.0
    %334 = vmatpush1.msra.mxu0 0.0
    %335 = vmatprep.subr.mxu0 0.0
    %336 = vmatpush1.msra.mxu0 0.0
    %337 = vmatprep.subr.mxu0 0.0
    %338 = vmatpush1.msra.mxu0 0.0
    %339 = vmatprep.subr.mxu0 0.0
    %340 = vmatpush1.msra.mxu0 0.0
    %341 = vmatprep.subr.mxu0 0.0
    %342 = vmatpush1.msra.mxu0 0.0
    %343 = vmatprep.subr.mxu0 0.0
    %344 = vmatpush1.msra.mxu0 0.0
    %345 = vmatprep.subr.mxu0 0.0
    %346 = vmatpush1.msra.mxu0 0.0
    %347 = vmatprep.subr.mxu0 0.0
    %348 = vmatpush1.msra.mxu0 0.0
    %349 = vmatprep.subr.mxu0 0.0
    %350 = vmatpush1.msra.mxu0 0.0
    %351 = vmatprep.subr.mxu0 0.0
    %352 = vmatpush1.msra.mxu0 0.0
    %353 = vmatprep.subr.mxu0 0.0
    %354 = vmatpush1.msra.mxu0 0.0
    %355 = vmatprep.subr.mxu0 0.0
    %356 = vmatpush1.msra.mxu0 0.0
    %357 = vmatprep.mubr.f32.mxu0 0.0
    %358 = vmatmul.mubr.f32.gmra.mrb[0].mxu0 %v291
    %v359 = vpop.f32.mrb[0].mxu0
    %v360 = vadd.f32 %v287, %v359
    %v361 = vpop.f32.mrb[0].mxu0
    %362 = vdwg.mxu0
    %v363 = vmax.f32 %v360, 0.0
    %364 = vmatprep.subr.mxu0 0.0
    %365 = vmatpush1.msra.mxu0 %v133
    %366 = vmatprep.subr.mxu0 0.0
    %367 = vmatpush1.msra.mxu0 %v138
    %368 = vmatprep.subr.mxu0 0.0
    %369 = vmatpush1.msra.mxu0 %v143
    %370 = vmatprep.subr.mxu0 0.0
    %371 = vmatpush1.msra.mxu0 %v148
    %372 = vmatprep.subr.mxu0 0.0
    %373 = vmatpush1.msra.mxu0 %v153
    %374 = vmatprep.subr.mxu0 0.0
    %375 = vmatpush1.msra.mxu0 %v158
    %376 = vmatprep.subr.mxu0 0.0
    %377 = vmatpush1.msra.mxu0 %v163
    %378 = vmatprep.subr.mxu0 0.0
    %379 = vmatpush1.msra.mxu0 %v168
    %380 = vmatprep.subr.mxu0 0.0
    %381 = vmatpush1.msra.mxu0 %v173
    %382 = vmatprep.subr.mxu0 0.0
    %383 = vmatpush1.msra.mxu0 %v178
    %384 = vmatprep.subr.mxu0 0.0
    %385 = vmatpush1.msra.mxu0 %v183
    %386 = vmatprep.subr.mxu0 0.0
    %387 = vmatpush1.msra.mxu0 %v188
    %388 = vmatprep.subr.mxu0 0.0
    %389 = vmatpush1.msra.mxu0 %v193
    %390 = vmatprep.subr.mxu0 0.0
    %391 = vmatpush1.msra.mxu0 %v198
    %392 = vmatprep.subr.mxu0 0.0
    %393 = vmatpush1.msra.mxu0 %v203
    %394 = vmatprep.subr.mxu0 0.0
    %395 = vmatpush1.msra.mxu0 %v208
    %396 = vmatprep.subr.mxu0 0.0
    %397 = vmatpush1.msra.mxu0 0.0
    %398 = vmatprep.subr.mxu0 0.0
    %399 = vmatpush1.msra.mxu0 0.0
    %400 = vmatprep.subr.mxu0 0.0
    %401 = vmatpush1.msra.mxu0 0.0
    %402 = vmatprep.subr.mxu0 0.0
    %403 = vmatpush1.msra.mxu0 0.0
    %404 = vmatprep.subr.mxu0 0.0
    %405 = vmatpush1.msra.mxu0 0.0
    %406 = vmatprep.subr.mxu0 0.0
    %407 = vmatpush1.msra.mxu0 0.0
    %408 = vmatprep.subr.mxu0 0.0
    %409 = vmatpush1.msra.mxu0 0.0
    %410 = vmatprep.subr.mxu0 0.0
    %411 = vmatpush1.msra.mxu0 0.0
    %412 = vmatprep.subr.mxu0 0.0
    %413 = vmatpush1.msra.mxu0 0.0
    %414 = vmatprep.subr.mxu0 0.0
    %415 = vmatpush1.msra.mxu0 0.0
    %416 = vmatprep.subr.mxu0 0.0
    %417 = vmatpush1.msra.mxu0 0.0
    %418 = vmatprep.subr.mxu0 0.0
    %419 = vmatpush1.msra.mxu0 0.0
    %420 = vmatprep.subr.mxu0 0.0
    %421 = vmatpush1.msra.mxu0 0.0
    %422 = vmatprep.subr.mxu0 0.0
    %423 = vmatpush1.msra.mxu0 0.0
    %424 = vmatprep.subr.mxu0 0.0
    %425 = vmatpush1.msra.mxu0 0.0
    %426 = vmatprep.subr.mxu0 0.0
    %427 = vmatpush1.msra.mxu0 0.0
    %428 = vmatprep.mubr.f32.mxu0 0.0
    %429 = vmatmul.mubr.f32.gmra.mrb[0].mxu0 %v363
    %v430 = vpop.f32.mrb[0].mxu0
    %v431 = vadd.f32 0.0, %v430
    %v432 = vpop.f32.mrb[0].mxu0
    %433 = vdwg.mxu0
    %v434 = vld [vmem:[%s4] sm:$0xff]
    %v435 = vld [vmem:[%s4 + $0x8] sm:$0xff]
    %v436 = vld [vmem:[%s5] sm:$0xff]
    %v437 = vld [vmem:[%s5 + $0x8] sm:$0xff]
    %439 = vset.pattern.permute.xlu0 0
    %440 = vperm.xlu0 %439, %v436
    %v441 = vpop.permute.xlu0 %440
    %444 = vset.pattern.permute.xlu0 0
    %445 = vperm.xlu0 %444, %v437
    %v446 = vpop.permute.xlu0 %445
    %v449 = vsel %vm289, %v434, 0
    %v452 = vsel %vm289, %v435, 0
    %454 = vmatprep.subr.mxu0 0.0
    %455 = vmatpush1.msra.mxu0 %v431
    %456 = vmatprep.subr.mxu0 0.0
    %457 = vmatpush1.msra.mxu0 0.0
    %458 = vmatprep.subr.mxu0 0.0
    %459 = vmatpush1.msra.mxu0 0.0
    %460 = vmatprep.subr.mxu0 0.0
    %461 = vmatpush1.msra.mxu0 0.0
    %462 = vmatprep.subr.mxu0 0.0
    %463 = vmatpush1.msra.mxu0 0.0
    %464 = vmatprep.subr.mxu0 0.0
    %465 = vmatpush1.msra.mxu0 0.0
    %466 = vmatprep.subr.mxu0 0.0
    %467 = vmatpush1.msra.mxu0 0.0
    %468 = vmatprep.subr.mxu0 0.0
    %469 = vmatpush1.msra.mxu0 0.0
    %470 = vmatprep.subr.mxu0 0.0
    %471 = vmatpush1.msra.mxu0 0.0
    %472 = vmatprep.subr.mxu0 0.0
    %473 = vmatpush1.msra.mxu0 0.0
    %474 = vmatprep.subr.mxu0 0.0
    %475 = vmatpush1.msra.mxu0 0.0
    %476 = vmatprep.subr.mxu0 0.0
    %477 = vmatpush1.msra.mxu0 0.0
    %478 = vmatprep.subr.mxu0 0.0
    %479 = vmatpush1.msra.mxu0 0.0
    %480 = vmatprep.subr.mxu0 0.0
    %481 = vmatpush1.msra.mxu0 0.0
    %482 = vmatprep.subr.mxu0 0.0
    %483 = vmatpush1.msra.mxu0 0.0
    %484 = vmatprep.subr.mxu0 0.0
    %485 = vmatpush1.msra.mxu0 0.0
    %486 = vmatprep.subr.mxu0 0.0
    %487 = vmatpush1.msra.mxu0 0.0
    %488 = vmatprep.subr.mxu0 0.0
    %489 = vmatpush1.msra.mxu0 0.0
    %490 = vmatprep.subr.mxu0 0.0
    %491 = vmatpush1.msra.mxu0 0.0
    %492 = vmatprep.subr.mxu0 0.0
    %493 = vmatpush1.msra.mxu0 0.0
    %494 = vmatprep.subr.mxu0 0.0
    %495 = vmatpush1.msra.mxu0 0.0
    %496 = vmatprep.subr.mxu0 0.0
    %497 = vmatpush1.msra.mxu0 0.0
    %498 = vmatprep.subr.mxu0 0.0
    %499 = vmatpush1.msra.mxu0 0.0
    %500 = vmatprep.subr.mxu0 0.0
    %501 = vmatpush1.msra.mxu0 0.0
    %502 = vmatprep.subr.mxu0 0.0
    %503 = vmatpush1.msra.mxu0 0.0
    %504 = vmatprep.subr.mxu0 0.0
    %505 = vmatpush1.msra.mxu0 0.0
    %506 = vmatprep.subr.mxu0 0.0
    %507 = vmatpush1.msra.mxu0 0.0
    %508 = vmatprep.subr.mxu0 0.0
    %509 = vmatpush1.msra.mxu0 0.0
    %510 = vmatprep.subr.mxu0 0.0
    %511 = vmatpush1.msra.mxu0 0.0
    %512 = vmatprep.subr.mxu0 0.0
    %513 = vmatpush1.msra.mxu0 0.0
    %514 = vmatprep.subr.mxu0 0.0
    %515 = vmatpush1.msra.mxu0 0.0
    %516 = vmatprep.subr.mxu0 0.0
    %517 = vmatpush1.msra.mxu0 0.0
    %518 = vmatprep.mubr.f32.mxu0 0.0
    %519 = vmatmul.mubr.f32.gmra.mrb[0].mxu0 %v449
    %v520 = vpop.f32.mrb[0].mxu0
    %v521 = vadd.f32 %v441, %v520
    %v522 = vpop.f32.mrb[0].mxu0
    %523 = vmatprep.mubr.f32.mxu0 0.0
    %524 = vmatmul.mubr.f32.gmra.mrb[0].mxu0 %v452
    %v525 = vpop.f32.mrb[0].mxu0
    %v526 = vadd.f32 %v446, %v525
    %v527 = vpop.f32.mrb[0].mxu0
    %528 = vdwg.mxu0
    %v529 = vmax.f32 %v521, 0.0
    %v530 = vmax.f32 %v526, 0.0
    %v531 = vld [vmem:[%s6] sm:$0x3]
    %532 = vmatprep.subr.mxu0 0.0
    %533 = vmatpush1.xpose.msra.mxu0 %v529
    %534 = vmatprep.subr.mxu0 0.0
    %535 = vmatpush1.xpose.msra.mxu0 %v530
    %536 = vmatprep.subr.mxu0 0.0
    %537 = vmatpush1.xpose.msra.mxu0 0.0
    %538 = vmatprep.subr.mxu0 0.0
    %539 = vmatpush1.xpose.msra.mxu0 0.0
    %540 = vmatprep.subr.mxu0 0.0
    %541 = vmatpush1.xpose.msra.mxu0 0.0
    %542 = vmatprep.subr.mxu0 0.0
    %543 = vmatpush1.xpose.msra.mxu0 0.0
    %544 = vmatprep.subr.mxu0 0.0
    %545 = vmatpush1.xpose.msra.mxu0 0.0
    %546 = vmatprep.subr.mxu0 0.0
    %547 = vmatpush1.xpose.msra.mxu0 0.0
    %548 = vmatprep.subr.mxu0 0.0
    %549 = vmatpush1.xpose.msra.mxu0 0.0
    %550 = vmatprep.subr.mxu0 0.0
    %551 = vmatpush1.xpose.msra.mxu0 0.0
    %552 = vmatprep.subr.mxu0 0.0
    %553 = vmatpush1.xpose.msra.mxu0 0.0
    %554 = vmatprep.subr.mxu0 0.0
    %555 = vmatpush1.xpose.msra.mxu0 0.0
    %556 = vmatprep.subr.mxu0 0.0
    %557 = vmatpush1.xpose.msra.mxu0 0.0
    %558 = vmatprep.subr.mxu0 0.0
    %559 = vmatpush1.xpose.msra.mxu0 0.0
    %560 = vmatprep.subr.mxu0 0.0
    %561 = vmatpush1.xpose.msra.mxu0 0.0
    %562 = vmatprep.subr.mxu0 0.0
    %563 = vmatpush1.xpose.msra.mxu0 0.0
    %564 = vmatprep.subr.mxu0 0.0
    %565 = vmatpush1.xpose.msra.mxu0 0.0
    %566 = vmatprep.subr.mxu0 0.0
    %567 = vmatpush1.xpose.msra.mxu0 0.0
    %568 = vmatprep.subr.mxu0 0.0
    %569 = vmatpush1.xpose.msra.mxu0 0.0
    %570 = vmatprep.subr.mxu0 0.0
    %571 = vmatpush1.xpose.msra.mxu0 0.0
    %572 = vmatprep.subr.mxu0 0.0
    %573 = vmatpush1.xpose.msra.mxu0 0.0
    %574 = vmatprep.subr.mxu0 0.0
    %575 = vmatpush1.xpose.msra.mxu0 0.0
    %576 = vmatprep.subr.mxu0 0.0
    %577 = vmatpush1.xpose.msra.mxu0 0.0
    %578 = vmatprep.subr.mxu0 0.0
    %579 = vmatpush1.xpose.msra.mxu0 0.0
    %580 = vmatprep.subr.mxu0 0.0
    %581 = vmatpush1.xpose.msra.mxu0 0.0
    %582 = vmatprep.subr.mxu0 0.0
    %583 = vmatpush1.xpose.msra.mxu0 0.0
    %584 = vmatprep.subr.mxu0 0.0
    %585 = vmatpush1.xpose.msra.mxu0 0.0
    %586 = vmatprep.subr.mxu0 0.0
    %587 = vmatpush1.xpose.msra.mxu0 0.0
    %588 = vmatprep.subr.mxu0 0.0
    %589 = vmatpush1.xpose.msra.mxu0 0.0
    %590 = vmatprep.subr.mxu0 0.0
    %591 = vmatpush1.xpose.msra.mxu0 0.0
    %592 = vmatprep.subr.mxu0 0.0
    %593 = vmatpush1.xpose.msra.mxu0 0.0
    %594 = vmatprep.subr.mxu0 0.0
    %595 = vmatpush1.xpose.msra.mxu0 0.0
    %596 = vmatprep.mubr.f32.mxu0 0.0
    %597 = vmatmul.mubr.f32.gmra.mrb[0].mxu0 %v531
    %v598 = vpop.f32.mrb[0].mxu0
    %v599 = vadd.f32 0.0, %v598
    %v600 = vpop.f32.mrb[0].mxu0
    %601 = vdwg.mxu0
    %vm602 = vcmp.gt.f32.partialorder %v531, 0.0
    %v603 = vsel %vm602, 1, 0
    %v605 = vunpack.c.l.s4 1966171168
    %v606 = vunpack.c.0.s8 %v605
    %v607 = vlaneseq
    %v608 = vshrl.u32 %v607, 7
    %v609 = vsub.s32 %v606, %v608
    %v610 = vrot.slane %v603, %v609
    %v611 = vcombine.high %v610, %v610
    %v613 = vunpack.c.l.s4 1966171168
    %v614 = vunpack.c.0.s8 %v613
    %v615 = vlaneseq
    %v616 = vshrl.u32 %v615, 7
    %v617 = vsub.s32 %v614, %v616
    %v618 = vrot.slane %v610, %v617
    %v620 = vunpack.c.l.s4 1966171168
    %v621 = vunpack.c.0.s8 %v620
    %v622 = vlaneseq
    %v623 = vshrl.u32 %v622, 7
    %v624 = vsub.s32 %v621, %v623
    %v625 = vrot.slane %v611, %v624
    %vm626 = vcmp.ne.s32.totalorder %v618, 0
    %vm627 = vcmp.ne.s32.totalorder %v625, 0
    %v628 = vsel %vm626, 1, 0
    %v629 = vsel %vm627, 1, 0
    %v630 = vlaneseq
    %v631 = vshrl.u32 %v630, 7
    %v632 = vsub.s32 0, %v631
    %v633 = vrot.slane %v628, %v632
    %v634 = vlaneseq
    %v635 = vshrl.u32 %v634, 7
    %v636 = vsub.s32 0, %v635
    %v637 = vrot.slane %v629, %v636
    %vm638 = vcmp.eq.s32.totalorder %v633, 1
    %vm639 = vcmp.eq.s32.totalorder %v637, 1
    %v640 = vsel %vm638, %v529, -1e+30
    %v641 = vsel %vm638, %v530, -1e+30
    %v642 = vsel %vm639, %v529, -1e+30
    %v643 = vsel %vm639, %v530, -1e+30
    %644 = vmax.xlane.f32.xlu0 %v640
    %v645 = vpop.xlane.xlu0 %644
    %646 = vmax.xlane.f32.xlu0 %v641
    %v647 = vpop.xlane.xlu0 %646
    %648 = vmax.xlane.f32.xlu0 %v642
    %v649 = vpop.xlane.xlu0 %648
    %650 = vmax.xlane.f32.xlu0 %v643
    %v651 = vpop.xlane.xlu0 %650
    %v652 = vld [vmem:[%s7] sm:$0xff]
    %v653 = vld [vmem:[%s7 + $0x8] sm:$0xff]
    %v654 = vld [vmem:[%s8] sm:$0xff]
    %v655 = vld [vmem:[%s8 + $0x8] sm:$0xff]
    %vm656 = vcmask 130048
    %v658 = vsel %vm656, %v599, 0
    %660 = vmatprep.subr.mxu0 0.0
    %661 = vmatpush1.msra.mxu0 %v654
    %662 = vmatprep.subr.mxu0 0.0
    %663 = vmatpush1.msra.mxu0 %v655
    %664 = vmatprep.subr.mxu0 0.0
    %665 = vmatpush1.msra.mxu0 0.0
    %666 = vmatprep.subr.mxu0 0.0
    %667 = vmatpush1.msra.mxu0 0.0
    %668 = vmatprep.subr.mxu0 0.0
    %669 = vmatpush1.msra.mxu0 0.0
    %670 = vmatprep.subr.mxu0 0.0
    %671 = vmatpush1.msra.mxu0 0.0
    %672 = vmatprep.subr.mxu0 0.0
    %673 = vmatpush1.msra.mxu0 0.0
    %674 = vmatprep.subr.mxu0 0.0
    %675 = vmatpush1.msra.mxu0 0.0
    %676 = vmatprep.subr.mxu0 0.0
    %677 = vmatpush1.msra.mxu0 0.0
    %678 = vmatprep.subr.mxu0 0.0
    %679 = vmatpush1.msra.mxu0 0.0
    %680 = vmatprep.subr.mxu0 0.0
    %681 = vmatpush1.msra.mxu0 0.0
    %682 = vmatprep.subr.mxu0 0.0
    %683 = vmatpush1.msra.mxu0 0.0
    %684 = vmatprep.subr.mxu0 0.0
    %685 = vmatpush1.msra.mxu0 0.0
    %686 = vmatprep.subr.mxu0 0.0
    %687 = vmatpush1.msra.mxu0 0.0
    %688 = vmatprep.subr.mxu0 0.0
    %689 = vmatpush1.msra.mxu0 0.0
    %690 = vmatprep.subr.mxu0 0.0
    %691 = vmatpush1.msra.mxu0 0.0
    %692 = vmatprep.subr.mxu0 0.0
    %693 = vmatpush1.msra.mxu0 0.0
    %694 = vmatprep.subr.mxu0 0.0
    %695 = vmatpush1.msra.mxu0 0.0
    %696 = vmatprep.subr.mxu0 0.0
    %697 = vmatpush1.msra.mxu0 0.0
    %698 = vmatprep.subr.mxu0 0.0
    %699 = vmatpush1.msra.mxu0 0.0
    %700 = vmatprep.subr.mxu0 0.0
    %701 = vmatpush1.msra.mxu0 0.0
    %702 = vmatprep.subr.mxu0 0.0
    %703 = vmatpush1.msra.mxu0 0.0
    %704 = vmatprep.subr.mxu0 0.0
    %705 = vmatpush1.msra.mxu0 0.0
    %706 = vmatprep.subr.mxu0 0.0
    %707 = vmatpush1.msra.mxu0 0.0
    %708 = vmatprep.subr.mxu0 0.0
    %709 = vmatpush1.msra.mxu0 0.0
    %710 = vmatprep.subr.mxu0 0.0
    %711 = vmatpush1.msra.mxu0 0.0
    %712 = vmatprep.subr.mxu0 0.0
    %713 = vmatpush1.msra.mxu0 0.0
    %714 = vmatprep.subr.mxu0 0.0
    %715 = vmatpush1.msra.mxu0 0.0
    %716 = vmatprep.subr.mxu0 0.0
    %717 = vmatpush1.msra.mxu0 0.0
    %718 = vmatprep.subr.mxu0 0.0
    %719 = vmatpush1.msra.mxu0 0.0
    %720 = vmatprep.subr.mxu0 0.0
    %721 = vmatpush1.msra.mxu0 0.0
    %722 = vmatprep.subr.mxu0 0.0
    %723 = vmatpush1.msra.mxu0 0.0
    %724 = vmatprep.mubr.f32.mxu0 0.0
    %725 = vmatmul.mubr.f32.gmra.mrb[0].mxu0 %v658
    %v726 = vpop.f32.mrb[0].mxu0
    %v727 = vadd.f32 0.0, %v726
    %v728 = vpop.f32.mrb[0].mxu0
    %729 = vdwg.mxu0
    %v734 = vlaneseq
    %v735 = vand.u32 %v734, 127
    %v736 = vlaneseq
    %v737 = vshrl.u32 %v736, 7
    %v738 = vsub.s32 %v735, %v737
    %v739 = vrot.slane %v645, %v738
    %v740 = vadd.s32 %v735, 4294967288
    %v741 = vlaneseq
    %v742 = vshrl.u32 %v741, 7
    %v743 = vsub.s32 %v740, %v742
    %v744 = vrot.slane %v647, %v743
    %vm745 = vcmask 130112
    %v746 = vsel %vm745, %v744, %v739
    %v747 = vlaneseq
    %v748 = vshrl.u32 %v747, 7
    %v749 = vsub.s32 %v735, %v748
    %v750 = vrot.slane %v649, %v749
    %v751 = vlaneseq
    %v752 = vshrl.u32 %v751, 7
    %v753 = vsub.s32 %v740, %v752
    %v754 = vrot.slane %v651, %v753
    %v755 = vsel %vm745, %v754, %v750
    %vm756 = vcmask 1041409
    %v757 = vsel %vm756, %v755, %v746
    %v758 = vsel %vm656, %v757, 0
    %760 = vmatprep.subr.mxu0 0.0
    %761 = vmatpush1.msra.mxu0 %v652
    %762 = vmatprep.subr.mxu0 0.0
    %763 = vmatpush1.msra.mxu0 %v653
    %764 = vmatprep.subr.mxu0 0.0
    %765 = vmatpush1.msra.mxu0 0.0
    %766 = vmatprep.subr.mxu0 0.0
    %767 = vmatpush1.msra.mxu0 0.0
    %768 = vmatprep.subr.mxu0 0.0
    %769 = vmatpush1.msra.mxu0 0.0
    %770 = vmatprep.subr.mxu0 0.0
    %771 = vmatpush1.msra.mxu0 0.0
    %772 = vmatprep.subr.mxu0 0.0
    %773 = vmatpush1.msra.mxu0 0.0
    %774 = vmatprep.subr.mxu0 0.0
    %775 = vmatpush1.msra.mxu0 0.0
    %776 = vmatprep.subr.mxu0 0.0
    %777 = vmatpush1.msra.mxu0 0.0
    %778 = vmatprep.subr.mxu0 0.0
    %779 = vmatpush1.msra.mxu0 0.0
    %780 = vmatprep.subr.mxu0 0.0
    %781 = vmatpush1.msra.mxu0 0.0
    %782 = vmatprep.subr.mxu0 0.0
    %783 = vmatpush1.msra.mxu0 0.0
    %784 = vmatprep.subr.mxu0 0.0
    %785 = vmatpush1.msra.mxu0 0.0
    %786 = vmatprep.subr.mxu0 0.0
    %787 = vmatpush1.msra.mxu0 0.0
    %788 = vmatprep.subr.mxu0 0.0
    %789 = vmatpush1.msra.mxu0 0.0
    %790 = vmatprep.subr.mxu0 0.0
    %791 = vmatpush1.msra.mxu0 0.0
    %792 = vmatprep.subr.mxu0 0.0
    %793 = vmatpush1.msra.mxu0 0.0
    %794 = vmatprep.subr.mxu0 0.0
    %795 = vmatpush1.msra.mxu0 0.0
    %796 = vmatprep.subr.mxu0 0.0
    %797 = vmatpush1.msra.mxu0 0.0
    %798 = vmatprep.subr.mxu0 0.0
    %799 = vmatpush1.msra.mxu0 0.0
    %800 = vmatprep.subr.mxu0 0.0
    %801 = vmatpush1.msra.mxu0 0.0
    %802 = vmatprep.subr.mxu0 0.0
    %803 = vmatpush1.msra.mxu0 0.0
    %804 = vmatprep.subr.mxu0 0.0
    %805 = vmatpush1.msra.mxu0 0.0
    %806 = vmatprep.subr.mxu0 0.0
    %807 = vmatpush1.msra.mxu0 0.0
    %808 = vmatprep.subr.mxu0 0.0
    %809 = vmatpush1.msra.mxu0 0.0
    %810 = vmatprep.subr.mxu0 0.0
    %811 = vmatpush1.msra.mxu0 0.0
    %812 = vmatprep.subr.mxu0 0.0
    %813 = vmatpush1.msra.mxu0 0.0
    %814 = vmatprep.subr.mxu0 0.0
    %815 = vmatpush1.msra.mxu0 0.0
    %816 = vmatprep.subr.mxu0 0.0
    %817 = vmatpush1.msra.mxu0 0.0
    %818 = vmatprep.subr.mxu0 0.0
    %819 = vmatpush1.msra.mxu0 0.0
    %820 = vmatprep.subr.mxu0 0.0
    %821 = vmatpush1.msra.mxu0 0.0
    %822 = vmatprep.subr.mxu0 0.0
    %823 = vmatpush1.msra.mxu0 0.0
    %824 = vmatprep.mubr.f32.mxu0 0.0
    %825 = vmatmul.mubr.f32.gmra.mrb[0].mxu0 %v758
    %v826 = vpop.f32.mrb[0].mxu0
    %v827 = vadd.f32 %v727, %v826
    %v828 = vpop.f32.mrb[0].mxu0
    %829 = vdwg.mxu0
    %v830 = vld [vmem:[%s9] sm:$0x1]
    %v832 = vlaneseq
    %v833 = vshrl.u32 %v832, 7
    %v834 = vsub.s32 0, %v833
    %v835 = vrot.slane %v830, %v834
    %v837 = vadd.f32 %v827, %v835
    %vm838 = vcmask 9216
    %839 = vst.msk [vmem:[#allocation5] sm:$0x3] %vm838, %v837
    // Predicated region
    $region46: #{tpu_custom_call.1} parent=1 // pred_check
      _
    $region47: #{tpu_custom_call.1} parent=1 // pred_check_branch
      %841 = sbr.rel (0) target = $region49
    $region48: #{tpu_custom_call.1} parent=1 // pred_region
      %s843 = ssub.s32 32, 32
      %844 = vsyncadd [#allocation4], %s843
      %s846 = sshll.u32 [#allocation5], 4
      %s847 = int_to_ptr.vmem [resolvable:$true] %s846
      %849 = dma.vmem_to_hbm [thread:$0]  %s847, 32, %s10, [#allocation4]
    $region49: #{tpu_custom_call.1} parent=1 // pred_fallthru
      _
    // Predicated region
    $region50: #{tpu_custom_call.1} parent=1 // pred_check
      _
    $region51: #{tpu_custom_call.1} parent=1 // pred_check_branch
      %851 = sbr.rel (0) target = $region53
    $region52: #{tpu_custom_call.1} parent=1 // pred_region
      %852 = dma.done [#allocation4], 32
    $region53: #{tpu_custom_call.1} parent=1 // pred_fallthru
      _
    %853 = vsyncpa [#allocation3], 1
    %854 = vsyncpa [#allocation4], 1

</llo_original>
